<compile_context>
chip_gen: v7x
topology: tpu7x:2x2x1
jax: 0.10.0
libtpu: 0.0.40
codegen_flags: <defaults>
</compile_context>

<pallas_src>
import functools

import jax
import jax.numpy as jnp
from jax import lax
from jax.experimental import pallas as pl
from jax.experimental.pallas import tpu as pltpu


def _round_up(n, m):
    return ((n + m - 1) // m) * m


def _largest_dividing_tile(hp, cap):
    """Largest multiple of 128 that divides hp and is <= cap (hp is a multiple of 128)."""
    cap = max(128, min(cap, hp))
    t = (cap // 128) * 128
    while t > 128 and hp % t != 0:
        t -= 128
    return t


def _vmem_bytes_estimate(tm, th, dp, op, x_bytes, out_bytes):
    """Rough per-core VMEM footprint of one pipelined step (double-buffered I/O)."""
    b = 2 * tm * dp * x_bytes          # x tile
    b += 2 * tm * op * out_bytes       # out tile
    b += 2 * dp * th * 2               # fc1 weight tile (bf16)
    b += 2 * th * op * 2               # fc2 weight tile (bf16)
    b += 2 * (2 * dp + th + op) * 4    # gamma/beta/b1/b2 blocks
    b += tm * dp * 2                   # xn scratch (bf16)
    b += tm * op * 4                   # fc2 accumulator scratch (f32)
    b += 3 * tm * th * 4               # h chunk f32 + bf16 copy + temporaries
    b += 2 * tm * dp * 4               # LayerNorm f32 temporaries headroom
    return b


def _mlp_kernel(x_ref, g_ref, b_ref, w1_ref, b1_ref, w2_ref, b2_ref, o_ref,
                xn_ref, acc_ref, *, eps, d_orig, approx_gelu):
    h_idx = pl.program_id(1)
    nh = pl.num_programs(1)

    # ---- h == 0: LayerNorm over the original D features (f32 stats), init acc ----
    @pl.when(h_idx == 0)
    def _():
        x = x_ref[...].astype(jnp.float32)                    # (tm, Dp)
        dp = x.shape[-1]
        if d_orig == dp:
            mean = jnp.mean(x, axis=-1, keepdims=True)
            var = jnp.mean(jnp.square(x - mean), axis=-1, keepdims=True)
        else:
            # Feature dim zero-padded to Dp lanes; stats over the real D columns only.
            inv_d = jnp.float32(1.0 / d_orig)
            lane = lax.broadcasted_iota(jnp.int32, (1, dp), 1)
            mask = lane < d_orig
            mean = jnp.sum(x, axis=-1, keepdims=True) * inv_d
            diff = jnp.where(mask, x - mean, 0.0)
            var = jnp.sum(diff * diff, axis=-1, keepdims=True) * inv_d
        xhat = (x - mean) * lax.rsqrt(var + eps)
        # gamma/beta zero-padded past D -> padded lanes of xn are exactly 0.
        xn = xhat * g_ref[...] + b_ref[...]
        xn_ref[...] = xn.astype(jnp.bfloat16)
        acc_ref[...] = jnp.zeros_like(acc_ref)

    # ---- fc1 chunk (bf16 MXU, f32 acc) + GELU on this h chunk ----
    h = jnp.dot(xn_ref[...], w1_ref[...],
                preferred_element_type=jnp.float32)           # (tm, th) f32
    h = h + b1_ref[...]
    if approx_gelu:
        # tanh-approx GELU (EUP path). Only if exact nn.GELU match is not required.
        c = jnp.float32(0.7978845608028654)
        h = 0.5 * h * (1.0 + jnp.tanh(c * (h + jnp.float32(0.044715) * h * h * h)))
    else:
        # exact erf GELU (nn.GELU default)
        h = 0.5 * h * (1.0 + lax.erf(h * jnp.float32(0.7071067811865476)))

    # dropout(p=0.0) is identity

    # ---- fc2 partial product accumulated in f32 ----
    acc_ref[...] += jnp.dot(h.astype(jnp.bfloat16), w2_ref[...],
                            preferred_element_type=jnp.float32)   # (tm, Op)

    # ---- last h step: bias add + store (dropout(p=0.0) identity) ----
    @pl.when(h_idx == nh - 1)
    def _():
        o_ref[...] = (acc_ref[...] + b2_ref[...]).astype(o_ref.dtype)


def mlp_prepare_params(gamma, beta, w1, b1, w2, b2):
    """One-time parameter prep: pad feature dims to multiples of 128 (lane-dense) and
    cast weights to bf16.  Call once per model / cache the result so the per-forward
    path does not pay a full f32->bf16 rewrite of the weight matrices."""
    D, H = w1.shape
    O = w2.shape[1]
    Dp, Hp, Op = _round_up(D, 128), _round_up(H, 128), _round_up(O, 128)

    def pad2(a, r, c):
        return a if a.shape == (r, c) else jnp.pad(
            a, ((0, r - a.shape[0]), (0, c - a.shape[1])))

    def pad1(a, n):
        return a if a.shape[0] == n else jnp.pad(a, (0, n - a.shape[0]))

    return dict(
        dims=(D, H, O),
        gamma=pad1(gamma, Dp).reshape(1, Dp).astype(jnp.float32),
        beta=pad1(beta, Dp).reshape(1, Dp).astype(jnp.float32),
        w1=pad2(w1, Dp, Hp).astype(jnp.bfloat16),
        b1=pad1(b1, Hp).reshape(1, Hp).astype(jnp.float32),
        w2=pad2(w2, Hp, Op).astype(jnp.bfloat16),
        b2=pad1(b2, Op).reshape(1, Op).astype(jnp.float32),
    )


def mlp_pallas(x, gamma=None, beta=None, w1=None, b1=None, w2=None, b2=None, *,
               params=None, eps=1e-5, tm=512, approx_gelu=False):
    """x: (..., D). Returns (..., O).  Pass `params=mlp_prepare_params(...)` to reuse
    the padded/bf16-cast weights across calls (recommended)."""
    if params is None:
        params = mlp_prepare_params(gamma, beta, w1, b1, w2, b2)
    D, H, O = params["dims"]

    *lead, Dx = x.shape
    assert Dx == D, (Dx, D)
    M = 1
    for s in lead:
        M *= s

    Dp = params["gamma"].shape[1]
    Hp = params["w1"].shape[1]
    Op = params["w2"].shape[1]

    x2 = x.reshape(M, D)
    if Dp != D:
        x2 = jnp.pad(x2, ((0, 0), (0, Dp - D)))

    out_dtype = x.dtype
    x_bytes = jnp.dtype(x2.dtype).itemsize
    out_bytes = jnp.dtype(out_dtype).itemsize

    # ---- per-core VMEM capacity (generation-aware; v7x-safe fallback) ----
    try:
        vmem_cap = int(pltpu.get_tpu_info().vmem_capacity_bytes)
    except Exception:
        vmem_cap = 64 * 1024 * 1024
    budget = int(vmem_cap * 0.8)

    # ---- tile selection ----
    # Large row tile to amortize per-grid-step overhead; clamp to the row count and,
    # for small M, to cdiv(M, 2) so the 'parallel' row axis has >= 2 steps (megacore).
    tm_eff = max(8, min(tm, _round_up(M, 8)))
    if M > 8:
        tm_eff = min(tm_eff, max(8, _round_up(pl.cdiv(M, 2), 8)))

    # Hidden tile: largest multiple of 128 dividing Hp (no partial h tiles), <= 512.
    th = _largest_dividing_tile(Hp, 512)
    while th > 128 and _vmem_bytes_estimate(tm_eff, th, Dp, Op, x_bytes, out_bytes) > budget:
        th = _largest_dividing_tile(Hp, th - 128)
    while tm_eff > 8 and _vmem_bytes_estimate(tm_eff, th, Dp, Op, x_bytes, out_bytes) > budget:
        tm_eff = max(8, _round_up(tm_eff // 2, 8))

    need = _vmem_bytes_estimate(tm_eff, th, Dp, Op, x_bytes, out_bytes)
    vmem_limit = int(min(0.9 * vmem_cap, max(need + (16 << 20), 32 << 20)))

    grid = (pl.cdiv(M, tm_eff), Hp // th)   # rows parallel, hidden reduction innermost

    out = pl.pallas_call(
        functools.partial(_mlp_kernel, eps=eps, d_orig=D, approx_gelu=approx_gelu),
        out_shape=jax.ShapeDtypeStruct((M, Op), out_dtype),
        grid_spec=pltpu.PrefetchScalarGridSpec(
            num_scalar_prefetch=0,
            grid=grid,
            in_specs=[
                pl.BlockSpec((tm_eff, Dp), lambda i, h: (i, 0)),   # x rows (resident over h)
                pl.BlockSpec((1, Dp), lambda i, h: (0, 0)),        # LN gamma
                pl.BlockSpec((1, Dp), lambda i, h: (0, 0)),        # LN beta
                pl.BlockSpec((Dp, th), lambda i, h: (0, h)),       # fc1 weight tile (bf16)
                pl.BlockSpec((1, th), lambda i, h: (0, h)),        # fc1 bias tile
                pl.BlockSpec((th, Op), lambda i, h: (h, 0)),       # fc2 weight tile (bf16)
                pl.BlockSpec((1, Op), lambda i, h: (0, 0)),        # fc2 bias
            ],
            out_specs=pl.BlockSpec((tm_eff, Op), lambda i, h: (i, 0)),
            scratch_shapes=[
                pltpu.VMEM((tm_eff, Dp), jnp.bfloat16),   # LayerNorm'ed rows, persist over h
                pltpu.VMEM((tm_eff, Op), jnp.float32),    # fc2 accumulator
            ],
        ),
        compiler_params=pltpu.CompilerParams(
            dimension_semantics=("parallel", "arbitrary"),
            vmem_limit_bytes=vmem_limit,
        ),
    )(x2, params["gamma"], params["beta"], params["w1"], params["b1"],
      params["w2"], params["b2"])

    if Op != O:
        out = out[:, :O]
    return out.reshape(*lead, O)


def mlp_reference(x, gamma, beta, w1, b1, w2, b2, *, eps=1e-5):
    mean = jnp.mean(x, axis=-1, keepdims=True)
    var = jnp.mean(jnp.square(x - mean), axis=-1, keepdims=True)
    xn = (x - mean) / jnp.sqrt(var + eps) * gamma + beta
    h = xn @ w1 + b1
    h = 0.5 * h * (1.0 + lax.erf(h / jnp.sqrt(2.0)))
    return h @ w2 + b2


if __name__ == "__main__":
    key = jax.random.PRNGKey(0)
    B, N, D = 2, 8, 32          # batch, tokens, in_features
    H = 64                      # hidden_features
    O = D                       # out_features defaults to in_features

    ks = jax.random.split(key, 8)
    x = jax.random.normal(ks[0], (B, N, D), dtype=jnp.float32)

    # deterministic synthetic parameters (LayerNorm default init: gamma=1, beta=0)
    gamma = jnp.ones((D,), jnp.float32)
    beta = jnp.zeros((D,), jnp.float32)
    w1 = jax.random.normal(ks[1], (D, H), jnp.float32) * 0.05
    b1 = jax.random.normal(ks[2], (H,), jnp.float32) * 0.01
    w2 = jax.random.normal(ks[3], (H, O), jnp.float32) * 0.05
    b2 = jax.random.normal(ks[4], (O,), jnp.float32) * 0.01

    # Prepare (pad + bf16-cast) the parameters once; reuse across forward calls.
    params = mlp_prepare_params(gamma, beta, w1, b1, w2, b2)

    y = mlp_pallas(x, params=params)
    y = jax.block_until_ready(y)

    y_ref = mlp_reference(x, gamma, beta, w1, b1, w2, b2)
    assert y.shape == (B, N, O), y.shape
    # bf16 matmul operands with f32 accumulation -> bf16-level tolerance
    assert jnp.allclose(y, y_ref, atol=1e-2, rtol=1e-2), float(
        jnp.max(jnp.abs(y - y_ref)))

    print("KERNEL_OK")
</pallas_src>

<mosaic_0001>
module attributes {stable_mosaic.version = 11 : i64} {
  func.func @_mlp_kernel(%arg0: i32, %arg1: i32, %arg2: memref<8x128xf32, #tpu.memory_space<vmem>>, %arg3: memref<1x128xf32, #tpu.memory_space<vmem>>, %arg4: memref<1x128xf32, #tpu.memory_space<vmem>>, %arg5: memref<128x128xbf16, #tpu.memory_space<vmem>>, %arg6: memref<1x128xf32, #tpu.memory_space<vmem>>, %arg7: memref<128x128xbf16, #tpu.memory_space<vmem>>, %arg8: memref<1x128xf32, #tpu.memory_space<vmem>>, %arg9: memref<8x128xf32, #tpu.memory_space<vmem>>, %arg10: memref<8x128xbf16, #tpu.memory_space<vmem>>, %arg11: memref<8x128xf32, #tpu.memory_space<vmem>>) attributes {dimension_semantics = [#tpu.dimension_semantics<parallel>, #tpu.dimension_semantics<arbitrary>], iteration_bounds = array<i64: 2, 1>, scalar_prefetch = 0 : i64, scratch_operands = 2 : i64, tpu.core_type = #tpu.core_type<tc>, window_params = [{transform_indices = @transform_0, window_bounds = array<i64: 8, 128>}, {pipeline_mode = #tpu.pipeline_mode<synchronous>, transform_indices = @transform_1, window_bounds = array<i64: 1, 128>}, {pipeline_mode = #tpu.pipeline_mode<synchronous>, transform_indices = @transform_2, window_bounds = array<i64: 1, 128>}, {transform_indices = @transform_3, window_bounds = array<i64: 128, 128>}, {transform_indices = @transform_4, window_bounds = array<i64: 1, 128>}, {transform_indices = @transform_5, window_bounds = array<i64: 128, 128>}, {pipeline_mode = #tpu.pipeline_mode<synchronous>, transform_indices = @transform_6, window_bounds = array<i64: 1, 128>}, {transform_indices = @transform_7, window_bounds = array<i64: 8, 128>}]} {
    %c0_i32 = arith.constant 0 : i32
    %0 = arith.cmpi eq, %arg1, %c0_i32 : i32
    %1 = arith.extui %0 : i1 to i32
    %c0_i32_0 = arith.constant 0 : i32
    %2 = arith.cmpi ne, %1, %c0_i32_0 : i32
    scf.if %2 {
      %c0_18 = arith.constant 0 : index
      %c0_19 = arith.constant 0 : index
      %26 = vector.load %arg2[%c0_18, %c0_19] : memref<8x128xf32, #tpu.memory_space<vmem>>, vector<8x128xf32>
      %27 = tpu.iota {dimensions = array<i32: 1>} : vector<1x128xi32>
      %c32_i32 = arith.constant 32 : i32
      %28 = vector.broadcast %c32_i32 : i32 to vector<1x128xi32>
      %29 = arith.cmpi slt, %27, %28 : vector<1x128xi32>
      %cst_20 = arith.constant dense<0.000000e+00> : vector<8xf32>
      %30 = vector.multi_reduction <add>, %26, %cst_20 [1] : vector<8x128xf32> to vector<8xf32>
      %31 = vector.shape_cast %30 : vector<8xf32> to vector<8x1xf32>
      %cst_21 = arith.constant 3.125000e-02 : f32
      %32 = vector.broadcast %cst_21 : f32 to vector<8x1xf32>
      %33 = arith.mulf %31, %32 : vector<8x1xf32>
      %34 = vector.broadcast %33 : vector<8x1xf32> to vector<8x128xf32>
      %35 = arith.subf %26, %34 : vector<8x128xf32>
      %cst_22 = arith.constant 0.000000e+00 : f32
      %36 = vector.shape_cast %29 : vector<1x128xi1> to vector<1x128xi1>
      %37 = vector.broadcast %36 : vector<1x128xi1> to vector<8x128xi1>
      %38 = vector.broadcast %cst_22 : f32 to vector<8x128xf32>
      %39 = arith.select %37, %35, %38 : vector<8x128xi1>, vector<8x128xf32>
      %40 = arith.mulf %39, %39 : vector<8x128xf32>
      %cst_23 = arith.constant dense<0.000000e+00> : vector<8xf32>
      %41 = vector.multi_reduction <add>, %40, %cst_23 [1] : vector<8x128xf32> to vector<8xf32>
      %42 = vector.shape_cast %41 : vector<8xf32> to vector<8x1xf32>
      %cst_24 = arith.constant 3.125000e-02 : f32
      %43 = vector.broadcast %cst_24 : f32 to vector<8x1xf32>
      %44 = arith.mulf %42, %43 : vector<8x1xf32>
      %45 = vector.broadcast %33 : vector<8x1xf32> to vector<8x128xf32>
      %46 = arith.subf %26, %45 : vector<8x128xf32>
      %cst_25 = arith.constant 9.99999974E-6 : f32
      %47 = vector.broadcast %cst_25 : f32 to vector<8x1xf32>
      %48 = arith.addf %44, %47 : vector<8x1xf32>
      %49 = math.rsqrt %48 : vector<8x1xf32>
      %50 = vector.broadcast %49 : vector<8x1xf32> to vector<8x128xf32>
      %51 = arith.mulf %46, %50 : vector<8x128xf32>
      %c0_26 = arith.constant 0 : index
      %c0_27 = arith.constant 0 : index
      %52 = vector.load %arg3[%c0_26, %c0_27] : memref<1x128xf32, #tpu.memory_space<vmem>>, vector<1x128xf32>
      %53 = vector.broadcast %52 : vector<1x128xf32> to vector<8x128xf32>
      %54 = arith.mulf %51, %53 : vector<8x128xf32>
      %c0_28 = arith.constant 0 : index
      %c0_29 = arith.constant 0 : index
      %55 = vector.load %arg4[%c0_28, %c0_29] : memref<1x128xf32, #tpu.memory_space<vmem>>, vector<1x128xf32>
      %56 = vector.broadcast %55 : vector<1x128xf32> to vector<8x128xf32>
      %57 = arith.addf %54, %56 : vector<8x128xf32>
      %58 = arith.truncf %57 : vector<8x128xf32> to vector<8x128xbf16>
      %c0_30 = arith.constant 0 : index
      %c0_31 = arith.constant 0 : index
      %59 = vector.load %arg10[%c0_30, %c0_31] : memref<8x128xbf16, #tpu.memory_space<vmem>>, vector<8x128xbf16>
      tpu.vector_store %arg10[%c0_30, %c0_31], %58 {strides = array<i32>} : memref<8x128xbf16, #tpu.memory_space<vmem>>, vector<8x128xbf16>,
      %cst_32 = arith.constant 0.000000e+00 : f32
      %60 = vector.broadcast %cst_32 : f32 to vector<8x128xf32>
      %c0_33 = arith.constant 0 : index
      %c0_34 = arith.constant 0 : index
      %61 = vector.load %arg11[%c0_33, %c0_34] : memref<8x128xf32, #tpu.memory_space<vmem>>, vector<8x128xf32>
      tpu.vector_store %arg11[%c0_33, %c0_34], %60 {strides = array<i32>} : memref<8x128xf32, #tpu.memory_space<vmem>>, vector<8x128xf32>,
    } else {
    }
    %c0 = arith.constant 0 : index
    %c0_1 = arith.constant 0 : index
    %3 = vector.load %arg10[%c0, %c0_1] : memref<8x128xbf16, #tpu.memory_space<vmem>>, vector<8x128xbf16>
    %c0_2 = arith.constant 0 : index
    %c0_3 = arith.constant 0 : index
    %4 = vector.load %arg5[%c0_2, %c0_3] : memref<128x128xbf16, #tpu.memory_space<vmem>>, vector<128x128xbf16>
    %cst = arith.constant dense<0.000000e+00> : vector<8x128xf32>
    %5 = tpu.matmul %3, %4, %cst {dimension_numbers = #tpu.dot_dimension_numbers<[1], [0], [0], [1], [0, 0, 1, 1], [], []>} : vector<8x128xbf16>, vector<128x128xbf16>, vector<8x128xf32> -> vector<8x128xf32>
    %c0_4 = arith.constant 0 : index
    %c0_5 = arith.constant 0 : index
    %6 = vector.load %arg6[%c0_4, %c0_5] : memref<1x128xf32, #tpu.memory_space<vmem>>, vector<1x128xf32>
    %7 = vector.broadcast %6 : vector<1x128xf32> to vector<8x128xf32>
    %8 = arith.addf %5, %7 : vector<8x128xf32>
    %cst_6 = arith.constant 5.000000e-01 : f32
    %9 = vector.broadcast %cst_6 : f32 to vector<8x128xf32>
    %10 = arith.mulf %9, %8 : vector<8x128xf32>
    %cst_7 = arith.constant 0.707106769 : f32
    %11 = vector.broadcast %cst_7 : f32 to vector<8x128xf32>
    %12 = arith.mulf %8, %11 : vector<8x128xf32>
    %13 = math.erf %12 : vector<8x128xf32>
    %cst_8 = arith.constant 1.000000e+00 : f32
    %14 = vector.broadcast %cst_8 : f32 to vector<8x128xf32>
    %15 = arith.addf %14, %13 : vector<8x128xf32>
    %16 = arith.mulf %10, %15 : vector<8x128xf32>
    %c0_9 = arith.constant 0 : index
    %c0_10 = arith.constant 0 : index
    %17 = vector.load %arg11[%c0_9, %c0_10] : memref<8x128xf32, #tpu.memory_space<vmem>>, vector<8x128xf32>
    %18 = arith.truncf %16 : vector<8x128xf32> to vector<8x128xbf16>
    %c0_11 = arith.constant 0 : index
    %c0_12 = arith.constant 0 : index
    %19 = vector.load %arg7[%c0_11, %c0_12] : memref<128x128xbf16, #tpu.memory_space<vmem>>, vector<128x128xbf16>
    %cst_13 = arith.constant dense<0.000000e+00> : vector<8x128xf32>
    %20 = tpu.matmul %18, %19, %cst_13 {dimension_numbers = #tpu.dot_dimension_numbers<[1], [0], [0], [1], [0, 0, 1, 1], [], []>} : vector<8x128xbf16>, vector<128x128xbf16>, vector<8x128xf32> -> vector<8x128xf32>
    %21 = arith.addf %17, %20 : vector<8x128xf32>
    %c0_14 = arith.constant 0 : index
    %c0_15 = arith.constant 0 : index
    %22 = vector.load %arg11[%c0_14, %c0_15] : memref<8x128xf32, #tpu.memory_space<vmem>>, vector<8x128xf32>
    tpu.vector_store %arg11[%c0_14, %c0_15], %21 {strides = array<i32>} : memref<8x128xf32, #tpu.memory_space<vmem>>, vector<8x128xf32>,
    %c0_i32_16 = arith.constant 0 : i32
    %23 = arith.cmpi eq, %arg1, %c0_i32_16 : i32
    %24 = arith.extui %23 : i1 to i32
    %c0_i32_17 = arith.constant 0 : i32
    %25 = arith.cmpi ne, %24, %c0_i32_17 : i32
    scf.if %25 {
      %c0_18 = arith.constant 0 : index
      %c0_19 = arith.constant 0 : index
      %26 = vector.load %arg11[%c0_18, %c0_19] : memref<8x128xf32, #tpu.memory_space<vmem>>, vector<8x128xf32>
      %c0_20 = arith.constant 0 : index
      %c0_21 = arith.constant 0 : index
      %27 = vector.load %arg8[%c0_20, %c0_21] : memref<1x128xf32, #tpu.memory_space<vmem>>, vector<1x128xf32>
      %28 = vector.broadcast %27 : vector<1x128xf32> to vector<8x128xf32>
      %29 = arith.addf %26, %28 : vector<8x128xf32>
      %c0_22 = arith.constant 0 : index
      %c0_23 = arith.constant 0 : index
      %30 = vector.load %arg9[%c0_22, %c0_23] : memref<8x128xf32, #tpu.memory_space<vmem>>, vector<8x128xf32>
      tpu.vector_store %arg9[%c0_22, %c0_23], %29 {strides = array<i32>} : memref<8x128xf32, #tpu.memory_space<vmem>>, vector<8x128xf32>,
    } else {
    }
    return
  }
  func.func @transform_0(%arg0: i32, %arg1: i32) -> (i32, i32) {
    %c0_i32 = arith.constant 0 : i32
    %c0_i32_0 = arith.constant 0 : i32
    return %arg0, %c0_i32 : i32, i32
  }
  func.func @transform_1(%arg0: i32, %arg1: i32) -> (i32, i32) {
    %c0_i32 = arith.constant 0 : i32
    %c0_i32_0 = arith.constant 0 : i32
    %c0_i32_1 = arith.constant 0 : i32
    return %c0_i32, %c0_i32_0 : i32, i32
  }
  func.func @transform_2(%arg0: i32, %arg1: i32) -> (i32, i32) {
    %c0_i32 = arith.constant 0 : i32
    %c0_i32_0 = arith.constant 0 : i32
    %c0_i32_1 = arith.constant 0 : i32
    return %c0_i32, %c0_i32_0 : i32, i32
  }
  func.func @transform_3(%arg0: i32, %arg1: i32) -> (i32, i32) {
    %c0_i32 = arith.constant 0 : i32
    %c0_i32_0 = arith.constant 0 : i32
    return %c0_i32, %arg1 : i32, i32
  }
  func.func @transform_4(%arg0: i32, %arg1: i32) -> (i32, i32) {
    %c0_i32 = arith.constant 0 : i32
    %c0_i32_0 = arith.constant 0 : i32
    return %c0_i32, %arg1 : i32, i32
  }
  func.func @transform_5(%arg0: i32, %arg1: i32) -> (i32, i32) {
    %c0_i32 = arith.constant 0 : i32
    %c0_i32_0 = arith.constant 0 : i32
    return %arg1, %c0_i32 : i32, i32
  }
  func.func @transform_6(%arg0: i32, %arg1: i32) -> (i32, i32) {
    %c0_i32 = arith.constant 0 : i32
    %c0_i32_0 = arith.constant 0 : i32
    %c0_i32_1 = arith.constant 0 : i32
    return %c0_i32, %c0_i32_0 : i32, i32
  }
  func.func @transform_7(%arg0: i32, %arg1: i32) -> (i32, i32) {
    %c0_i32 = arith.constant 0 : i32
    %c0_i32_0 = arith.constant 0 : i32
    return %arg0, %c0_i32 : i32, i32
  }
}

</mosaic_0001>

<llo_original>
// kernel: tpu_custom_call.1
$region0: #{tpu_custom_call.1}
  #allocation0 [shape = 'u32[]', space=smem, size = 0x4, offset = 0x4, fixed_abs, tag = 'smem constant byte address 0x4 - core index']
  #allocation1 [shape = 'u32[144,128]{1,0:T(1,128)}', space=vmem, size = 0x12000, scoped, tag = 'internal scratch']
  #allocation2 [shape = 'bf16[8,128]{1,0:T(8,128)(2,1)}', space=vmem, size = 0x800, scoped, tag = 'scratch operand']
  #allocation3 [shape = 'f32[8,128]{1,0:T(8,128)}', space=vmem, size = 0x1000, scoped, tag = 'scratch operand']
  %s0 = inlined_call_operand.hbm [shape: f32[16,128], index: 0, kind: input, shape index: {}]
  %s1 = inlined_call_operand.vmem [shape: f32[1,128], index: 1, kind: input, shape index: {}]
  %s2 = inlined_call_operand.vmem [shape: f32[1,128], index: 2, kind: input, shape index: {}]
  %s3 = inlined_call_operand.hbm [shape: bf16[128,128], index: 3, kind: input, shape index: {}]
  %s4 = inlined_call_operand.vmem [shape: f32[1,128], index: 4, kind: input, shape index: {}]
  %s5 = inlined_call_operand.hbm [shape: bf16[128,128], index: 5, kind: input, shape index: {}]
  %s6 = inlined_call_operand.vmem [shape: f32[1,128], index: 6, kind: input, shape index: {}]
  %s7 = inlined_call_operand.hbm [shape: f32[16,128], index: 7, kind: output, shape index: {}]
  %s8 = sld [smem:[#allocation0]]
  $region81: #{tpu_custom_call.1} parent=0
    _
  %s10 = ssub.s32 1, %s8
  %s11 = scalar_select 0, %s10, %s8
  $region1: #{tpu_custom_call.1} parent=0
    #allocation4 [shape = 'u8[8192]{0}', space=vmem, size = 0x2000, scoped, tag = 'input window, operand 0']
    #allocation5 [shape = 's32[2]{0}', space=sflag, size = 0x8, scoped, tag = 'scoped memory for tpu_custom_call.1']
    #allocation6 [shape = 's32[2]{0}', space=sflag, size = 0x8, scoped, tag = 'scoped memory for tpu_custom_call.1']
    #allocation7 [shape = 'u8[32768]{0}', space=vmem, size = 0x8000, scoped, tag = 'input window, operand 3, single buffered']
    #allocation8 [shape = 's32[1]{0}', space=sflag, size = 0x4, scoped, tag = 'scoped memory for tpu_custom_call.1']
    #allocation9 [shape = 'u8[32768]{0}', space=vmem, size = 0x8000, scoped, tag = 'input window, operand 5, single buffered']
    #allocation10 [shape = 'u8[8192]{0}', space=vmem, size = 0x2000, scoped, tag = 'output window, operand 0']
    %12 = vsyncpa [#allocation5], 0
    %s13 = scalar_lea.sflag [#allocation5], 1
    %14 = vsyncpa %s13, 0
    %15 = vsyncpa [#allocation8], 0
    %16 = vsyncpa [#allocation6], 0
    %s17 = scalar_lea.sflag [#allocation6], 1
    %18 = vsyncpa %s17, 0
    loop: start=0, step=1, limit=4
    $region2: #{tpu_custom_call.1} parent=1 // loop_pre_header
      _
    $region3: #{tpu_custom_call.1} parent=1 // loop_header
      %s20 = sphi 0, %s24
      %p21 = scmp.ge.s32.totalorder %s20, 4
      %s27 = sphi 0, %s39
      %s28 = sphi 0, %s35
      %s29 = sphi 0, %s27
      %s30 = sphi 0, %s28
      %s31 = sphi 0, %s29
      %s32 = sphi 0, %s30
      %s42 = sphi 0, %s44
      %s45 = sphi 0, %s42
      %s46 = sphi 0, %s45
      %s62 = sphi 0, %s46
      %s66 = sphi 0, %s66
      %s68 = sphi 0, %s66
      %s69 = sphi 0, %s68
      %s83 = sphi 0, %s69
      %s87 = sphi 0, %s87
      %s89 = sphi 0, %s87
      %s90 = sphi 0, %s89
      %s104 = sphi 0, %s90
      %s110 = sphi 0, %s112
      %s113 = sphi 0, %s110
      %s114 = sphi 0, %s113
      %s130 = sphi 0, %s114
      %s136 = sphi 0, %s138
      %s139 = sphi 0, %s136
      %s140 = sphi 0, %s139
      %s156 = sphi 0, %s140
      %s162 = sphi 0, %s164
      %s165 = sphi 0, %s162
      %s166 = sphi 0, %s165
      %s182 = sphi 0, %s166
      %s186 = sphi 0, %s186
      %s188 = sphi 0, %s186
      %s189 = sphi 0, %s188
      %s203 = sphi 0, %s189
      %s209 = sphi 0, %s211
      %s212 = sphi 0, %s209
      %s213 = sphi 0, %s212
      %s229 = sphi 0, %s213
    $region4: #{tpu_custom_call.1} parent=1 // loop_header_branch
      %23 = sbr.rel (%p21) target = $region8
    $region5: #{tpu_custom_call.1} parent=1 // loop_body
      %s25 = ssub.s32 %s20, 1
      %s26 = ssub.s32 %s20, 2
      %s33 = sadd.s32 1, %s28
      %p34 = scmp.ge.s32.totalorder %s33, 1
      %s35 = scalar_select %p34, 0, %s33
      %s36 = sadd.s32 1, %s27
      %s37 = scalar_select %p34, %s36, %s27
      %p38 = scmp.ge.s32.totalorder %s37, 2
      %s39 = scalar_select %p38, 0, %s37
      %s40 = ssub.s32 %s27, %s39
      %p41 = scmp.eq.s32.totalorder %s40, 0
      %s43 = sadd.s32 %s42, 1
      %s44 = scalar_select %p41, %s42, %s43
      %p47 = pneg %p41
      %p48 = scmp.eq.s32.totalorder %s20, 1
      %p49 = por %p47, %p48
      %p50 = scmp.ne.s32.totalorder %s42, %s45
      %p51 = scmp.eq.s32.totalorder %s20, 0
      %p52 = por %p50, %p51
      %p53 = scmp.ne.s32.totalorder %s42, %s45
      %p54 = scmp.eq.s32.totalorder %s25, 1
      %p55 = por %p53, %p54
      %p56 = scmp.ne.s32.totalorder %s45, %s46
      %p57 = scmp.eq.s32.totalorder %s25, 0
      %p58 = por %p56, %p57
      %p59 = scmp.ne.s32.totalorder %s45, %s46
      %p60 = scmp.eq.s32.totalorder %s26, 1
      %p61 = por %p59, %p60
      %p63 = scmp.ne.s32.totalorder %s46, %s62
      %p64 = scmp.eq.s32.totalorder %s26, 0
      %p65 = por %p63, %p64
      %s67 = sadd.s32 %s66, 1
      %p70 = scmp.eq.s32.totalorder %s20, 1
      %p71 = scmp.ne.s32.totalorder %s66, %s68
      %p72 = scmp.eq.s32.totalorder %s20, 0
      %p73 = por %p71, %p72
      %p74 = scmp.ne.s32.totalorder %s66, %s68
      %p75 = scmp.eq.s32.totalorder %s25, 1
      %p76 = por %p74, %p75
      %p77 = scmp.ne.s32.totalorder %s68, %s69
      %p78 = scmp.eq.s32.totalorder %s25, 0
      %p79 = por %p77, %p78
      %p80 = scmp.ne.s32.totalorder %s68, %s69
      %p81 = scmp.eq.s32.totalorder %s26, 1
      %p82 = por %p80, %p81
      %p84 = scmp.ne.s32.totalorder %s69, %s83
      %p85 = scmp.eq.s32.totalorder %s26, 0
      %p86 = por %p84, %p85
      %s88 = sadd.s32 %s87, 1
      %p91 = scmp.eq.s32.totalorder %s20, 1
      %p92 = scmp.ne.s32.totalorder %s87, %s89
      %p93 = scmp.eq.s32.totalorder %s20, 0
      %p94 = por %p92, %p93
      %p95 = scmp.ne.s32.totalorder %s87, %s89
      %p96 = scmp.eq.s32.totalorder %s25, 1
      %p97 = por %p95, %p96
      %p98 = scmp.ne.s32.totalorder %s89, %s90
      %p99 = scmp.eq.s32.totalorder %s25, 0
      %p100 = por %p98, %p99
      %p101 = scmp.ne.s32.totalorder %s89, %s90
      %p102 = scmp.eq.s32.totalorder %s26, 1
      %p103 = por %p101, %p102
      %p105 = scmp.ne.s32.totalorder %s90, %s104
      %p106 = scmp.eq.s32.totalorder %s26, 0
      %p107 = por %p105, %p106
      %s108 = ssub.s32 %s28, %s35
      %p109 = scmp.eq.s32.totalorder %s108, 0
      %s111 = sadd.s32 %s110, 1
      %s112 = scalar_select %p109, %s110, %s111
      %p115 = pneg %p109
      %p116 = scmp.eq.s32.totalorder %s20, 1
      %p117 = por %p115, %p116
      %p118 = scmp.ne.s32.totalorder %s110, %s113
      %p119 = scmp.eq.s32.totalorder %s20, 0
      %p120 = por %p118, %p119
      %p121 = scmp.ne.s32.totalorder %s110, %s113
      %p122 = scmp.eq.s32.totalorder %s25, 1
      %p123 = por %p121, %p122
      %p124 = scmp.ne.s32.totalorder %s113, %s114
      %p125 = scmp.eq.s32.totalorder %s25, 0
      %p126 = por %p124, %p125
      %p127 = scmp.ne.s32.totalorder %s113, %s114
      %p128 = scmp.eq.s32.totalorder %s26, 1
      %p129 = por %p127, %p128
      %p131 = scmp.ne.s32.totalorder %s114, %s130
      %p132 = scmp.eq.s32.totalorder %s26, 0
      %p133 = por %p131, %p132
      %s134 = ssub.s32 %s28, %s35
      %p135 = scmp.eq.s32.totalorder %s134, 0
      %s137 = sadd.s32 %s136, 1
      %s138 = scalar_select %p135, %s136, %s137
      %p141 = pneg %p135
      %p142 = scmp.eq.s32.totalorder %s20, 1
      %p143 = por %p141, %p142
      %p144 = scmp.ne.s32.totalorder %s136, %s139
      %p145 = scmp.eq.s32.totalorder %s20, 0
      %p146 = por %p144, %p145
      %p147 = scmp.ne.s32.totalorder %s136, %s139
      %p148 = scmp.eq.s32.totalorder %s25, 1
      %p149 = por %p147, %p148
      %p150 = scmp.ne.s32.totalorder %s139, %s140
      %p151 = scmp.eq.s32.totalorder %s25, 0
      %p152 = por %p150, %p151
      %p153 = scmp.ne.s32.totalorder %s139, %s140
      %p154 = scmp.eq.s32.totalorder %s26, 1
      %p155 = por %p153, %p154
      %p157 = scmp.ne.s32.totalorder %s140, %s156
      %p158 = scmp.eq.s32.totalorder %s26, 0
      %p159 = por %p157, %p158
      %s160 = ssub.s32 %s28, %s35
      %p161 = scmp.eq.s32.totalorder %s160, 0
      %s163 = sadd.s32 %s162, 1
      %s164 = scalar_select %p161, %s162, %s163
      %p167 = pneg %p161
      %p168 = scmp.eq.s32.totalorder %s20, 1
      %p169 = por %p167, %p168
      %p170 = scmp.ne.s32.totalorder %s162, %s165
      %p171 = scmp.eq.s32.totalorder %s20, 0
      %p172 = por %p170, %p171
      %p173 = scmp.ne.s32.totalorder %s162, %s165
      %p174 = scmp.eq.s32.totalorder %s25, 1
      %p175 = por %p173, %p174
      %p176 = scmp.ne.s32.totalorder %s165, %s166
      %p177 = scmp.eq.s32.totalorder %s25, 0
      %p178 = por %p176, %p177
      %p179 = scmp.ne.s32.totalorder %s165, %s166
      %p180 = scmp.eq.s32.totalorder %s26, 1
      %p181 = por %p179, %p180
      %p183 = scmp.ne.s32.totalorder %s166, %s182
      %p184 = scmp.eq.s32.totalorder %s26, 0
      %p185 = por %p183, %p184
      %s187 = sadd.s32 %s186, 1
      %p190 = scmp.eq.s32.totalorder %s20, 1
      %p191 = scmp.ne.s32.totalorder %s186, %s188
      %p192 = scmp.eq.s32.totalorder %s20, 0
      %p193 = por %p191, %p192
      %p194 = scmp.ne.s32.totalorder %s186, %s188
      %p195 = scmp.eq.s32.totalorder %s25, 1
      %p196 = por %p194, %p195
      %p197 = scmp.ne.s32.totalorder %s188, %s189
      %p198 = scmp.eq.s32.totalorder %s25, 0
      %p199 = por %p197, %p198
      %p200 = scmp.ne.s32.totalorder %s188, %s189
      %p201 = scmp.eq.s32.totalorder %s26, 1
      %p202 = por %p200, %p201
      %p204 = scmp.ne.s32.totalorder %s189, %s203
      %p205 = scmp.eq.s32.totalorder %s26, 0
      %p206 = por %p204, %p205
      %s207 = ssub.s32 %s27, %s39
      %p208 = scmp.eq.s32.totalorder %s207, 0
      %s210 = sadd.s32 %s209, 1
      %s211 = scalar_select %p208, %s209, %s210
      %p214 = pneg %p208
      %p215 = scmp.eq.s32.totalorder %s20, 1
      %p216 = por %p214, %p215
      %p217 = scmp.ne.s32.totalorder %s209, %s212
      %p218 = scmp.eq.s32.totalorder %s20, 0
      %p219 = por %p217, %p218
      %p220 = scmp.ne.s32.totalorder %s209, %s212
      %p221 = scmp.eq.s32.totalorder %s25, 1
      %p222 = por %p220, %p221
      %p223 = scmp.ne.s32.totalorder %s212, %s213
      %p224 = scmp.eq.s32.totalorder %s25, 0
      %p225 = por %p223, %p224
      %p226 = scmp.ne.s32.totalorder %s212, %s213
      %p227 = scmp.eq.s32.totalorder %s26, 1
      %p228 = por %p226, %p227
      %p230 = scmp.ne.s32.totalorder %s213, %s229
      %p231 = scmp.eq.s32.totalorder %s26, 0
      %p232 = por %p230, %p231
      %p233 = scmp.le.s32.totalorder 1, %s20
      %p234 = scmp.lt.s32.totalorder %s20, 3
      %p235 = pnand %p233, %p234
      %p236 = pneg %p235
      // Predicated region
      $region9: #{tpu_custom_call.1} parent=5 // pred_check
        _
      $region10: #{tpu_custom_call.1} parent=5 // pred_check_branch
        %238 = sbr.rel (%p235) target = $region12
      $region11: #{tpu_custom_call.1} parent=5 // pred_region
        %s239 = ssub.s32 %s20, 1
        // Predicated region
        $region13: #{tpu_custom_call.1} parent=11 // pred_check
          %p240 = pneg %p79
        $region14: #{tpu_custom_call.1} parent=11 // pred_check_branch
          %242 = sbr.rel (%p240) target = $region16
        $region15: #{tpu_custom_call.1} parent=11 // pred_region
          _
        $region16: #{tpu_custom_call.1} parent=11 // pred_fallthru
          _
        // Predicated region
        $region17: #{tpu_custom_call.1} parent=11 // pred_check
          %p243 = pneg %p100
        $region18: #{tpu_custom_call.1} parent=11 // pred_check_branch
          %245 = sbr.rel (%p243) target = $region20
        $region19: #{tpu_custom_call.1} parent=11 // pred_region
          _
        $region20: #{tpu_custom_call.1} parent=11 // pred_fallthru
          _
        // Predicated region
        $region21: #{tpu_custom_call.1} parent=11 // pred_check
          %p246 = pneg %p126
        $region22: #{tpu_custom_call.1} parent=11 // pred_check_branch
          %248 = sbr.rel (%p246) target = $region24
        $region23: #{tpu_custom_call.1} parent=11 // pred_region
          %s250 = ssub.s32 1024, 1024
          %251 = vsyncadd [#allocation8], %s250
          %s252 = smul.addr %s30, 64
          %s253 = scalar_lea.hbm %s3, %s252
          %s254 = sshll.u32 [#allocation7], 4
          %s255 = int_to_ptr.vmem [resolvable:$true] %s254
          %260 = dma.hbm_to_vmem [thread:$0]  %s253, 1024, %s255, [#allocation8], 64, 64, 4
        $region24: #{tpu_custom_call.1} parent=11 // pred_fallthru
          _
        // Predicated region
        $region25: #{tpu_custom_call.1} parent=11 // pred_check
          %p261 = pneg %p152
        $region26: #{tpu_custom_call.1} parent=11 // pred_check_branch
          %263 = sbr.rel (%p261) target = $region28
        $region27: #{tpu_custom_call.1} parent=11 // pred_region
          %p264 = scmp.lt.s32.totalorder %s30, 0
          %s265 = scalar_select %p264, %s30, 0
          %s266 = scalar_lea.vmem %s4, %s265
        $region28: #{tpu_custom_call.1} parent=11 // pred_fallthru
          _
        // Predicated region
        $region29: #{tpu_custom_call.1} parent=11 // pred_check
          %p267 = pneg %p178
        $region30: #{tpu_custom_call.1} parent=11 // pred_check_branch
          %269 = sbr.rel (%p267) target = $region32
        $region31: #{tpu_custom_call.1} parent=11 // pred_region
          %s270 = smul.u32 16, %s30
          %s272 = ssub.s32 1024, 1024
          %273 = vsyncadd [#allocation8], %s272
          %s274 = smul.addr %s270, 64
          %s275 = scalar_lea.hbm %s5, %s274
          %s276 = sshll.u32 [#allocation9], 4
          %s277 = int_to_ptr.vmem [resolvable:$true] %s276
          %282 = dma.hbm_to_vmem [thread:$0]  %s275, 1024, %s277, [#allocation8], 64, 64, 4
        $region32: #{tpu_custom_call.1} parent=11 // pred_fallthru
          _
        // Predicated region
        $region33: #{tpu_custom_call.1} parent=11 // pred_check
          %p283 = pneg %p199
        $region34: #{tpu_custom_call.1} parent=11 // pred_check_branch
          %285 = sbr.rel (%p283) target = $region36
        $region35: #{tpu_custom_call.1} parent=11 // pred_region
          _
        $region36: #{tpu_custom_call.1} parent=11 // pred_fallthru
          _
      $region12: #{tpu_custom_call.1} parent=5 // pred_fallthru
        _
      %p286 = scmp.lt.s32.totalorder %s20, 2
      // Predicated region
      $region37: #{tpu_custom_call.1} parent=5 // pred_check
        %p287 = pneg %p286
      $region38: #{tpu_custom_call.1} parent=5 // pred_check_branch
        %289 = sbr.rel (%p287) target = $region40
      $region39: #{tpu_custom_call.1} parent=5 // pred_region
        // Predicated region
        $region41: #{tpu_custom_call.1} parent=39 // pred_check
          %p290 = pneg %p52
        $region42: #{tpu_custom_call.1} parent=39 // pred_check_branch
          %292 = sbr.rel (%p290) target = $region44
        $region43: #{tpu_custom_call.1} parent=39 // pred_region
          %s293 = sand.u32 %s42, 1
          %s294 = scalar_lea.sflag [#allocation5], %s293
          %s295 = sand.u32 %s42, 1
          %s296 = smul.addr %s295, 8
          %s297 = scalar_lea.vmem [#allocation4], %s296
          %s299 = ssub.s32 128, 128
          %300 = vsyncadd %s294, %s299
          %s301 = smul.addr %s27, 128
          %s302 = scalar_lea.hbm %s0, %s301
          %s304 = sshll.u32 %s297, 4
          %s305 = int_to_ptr.vmem [resolvable:$true] %s304
          %307 = dma.hbm_to_vmem [thread:$0]  %s302, 128, %s305, %s294
        $region44: #{tpu_custom_call.1} parent=39 // pred_fallthru
          _
      $region40: #{tpu_custom_call.1} parent=5 // pred_fallthru
        _
      %p308 = scmp.le.s32.totalorder 1, %s20
      %p309 = scmp.lt.s32.totalorder %s20, 3
      %p310 = pnand %p308, %p309
      %p311 = pneg %p310
      // Predicated region
      $region45: #{tpu_custom_call.1} parent=5 // pred_check
        _
      $region46: #{tpu_custom_call.1} parent=5 // pred_check_branch
        %313 = sbr.rel (%p310) target = $region48
      $region47: #{tpu_custom_call.1} parent=5 // pred_region
        %s314 = ssub.s32 %s20, 1
        %s315 = sand.u32 %s45, 1
        %s316 = scalar_lea.sflag [#allocation5], %s315
        %s317 = sand.u32 %s45, 1
        %s318 = smul.addr %s317, 8
        %s319 = scalar_lea.vmem [#allocation4], %s318
        // Predicated region
        $region49: #{tpu_custom_call.1} parent=47 // pred_check
          %p320 = pneg %p58
        $region50: #{tpu_custom_call.1} parent=47 // pred_check_branch
          %322 = sbr.rel (%p320) target = $region52
        $region51: #{tpu_custom_call.1} parent=47 // pred_region
          %323 = dma.done %s316, 128
        $region52: #{tpu_custom_call.1} parent=47 // pred_fallthru
          _
        // Predicated region
        $region53: #{tpu_custom_call.1} parent=47 // pred_check
          %p324 = pneg %p126
        $region54: #{tpu_custom_call.1} parent=47 // pred_check_branch
          %326 = sbr.rel (%p324) target = $region56
        $region55: #{tpu_custom_call.1} parent=47 // pred_region
          %327 = dma.done [#allocation8], 1024
        $region56: #{tpu_custom_call.1} parent=47 // pred_fallthru
          _
        // Predicated region
        $region57: #{tpu_custom_call.1} parent=47 // pred_check
          %p328 = pneg %p178
        $region58: #{tpu_custom_call.1} parent=47 // pred_check_branch
          %330 = sbr.rel (%p328) target = $region60
        $region59: #{tpu_custom_call.1} parent=47 // pred_region
          %331 = dma.done [#allocation8], 1024
        $region60: #{tpu_custom_call.1} parent=47 // pred_fallthru
          _
        %s332 = sand.u32 %s45, 1
        %s333 = scalar_lea.sflag [#allocation5], %s332
        %s334 = sand.u32 %s45, 1
        %s335 = smul.addr %s334, 8
        %s336 = scalar_lea.vmem [#allocation4], %s335
        %p337 = pneg %p58
        %p338 = pneg %p55
        %p339 = pneg %p79
        %p340 = pneg %p76
        %p341 = pneg %p100
        %p342 = pneg %p97
        %p343 = pneg %p126
        %p344 = pneg %p123
        %p345 = scmp.lt.s32.totalorder %s30, 0
        %s346 = scalar_select %p345, %s30, 0
        %s347 = scalar_lea.vmem %s4, %s346
        %p348 = pneg %p152
        %p349 = pneg %p149
        %p350 = pneg %p178
        %p351 = pneg %p175
        %p352 = pneg %p199
        %p353 = pneg %p196
        %p354 = pneg %p225
        %p355 = pneg %p222
        %s356 = sand.u32 %s212, 1
        %s357 = scalar_lea.sflag [#allocation6], %s356
        %s358 = sand.u32 %s212, 1
        %s359 = smul.addr %s358, 8
        %s360 = scalar_lea.vmem [#allocation10], %s359
        %p361 = scmp.lt.s32.totalorder %s30, 0
        %s362 = scalar_select %p361, %s30, 0
        %s363 = scalar_lea.vmem %s4, %s362
        %s364 = smul.u32 16, %s30
        %p366 = scmp.eq.s32.totalorder %s30, 0
        // Predicated region
        $region61: #{tpu_custom_call.1} parent=47 // pred_check
          %p367 = pneg %p366
        $region62: #{tpu_custom_call.1} parent=47 // pred_check_branch
          %369 = sbr.rel (%p367) target = $region64
        $region63: #{tpu_custom_call.1} parent=47 // pred_region
          %v370 = vld [vmem:[%s319] sm:$0xff]
          %v371 = vlaneseq
          %v372 = vand.u32 %v371, 127
          %vm373 = vcmp.lt.s32.totalorder %v372, 32
          %374 = vadd.xlane.f32.xlu0 %v370
          %v375 = vpop.xlane.xlu0 %374
          %v376 = vmul.f32 %v375, 0.03125
          %v377 = vsub.f32 %v370, %v376
          %v378 = vsel %vm373, 1, 0
          %vm379 = vcmp.eq.s32.totalorder %v378, 1
          %v380 = vsel %vm379, %v377, 0.0
          %v381 = vmul.f32 %v380, %v380
          %382 = vadd.xlane.f32.xlu0 %v381
          %v383 = vpop.xlane.xlu0 %382
          %v384 = vmul.f32 %v383, 0.03125
          %v385 = vadd.f32 %v384, 1e-05
          %v386 = vrsqrt.pop %v385
          %v387 = vmul.f32 %v377, %v386
          %v388 = vld [vmem:[%s1] sm:$0x1]
          %v390 = vlaneseq
          %v391 = vshrl.u32 %v390, 7
          %v392 = vsub.s32 0, %v391
          %v393 = vrot.slane %v388, %v392
          %v395 = vmul.f32 %v387, %v393
          %v396 = vld [vmem:[%s2] sm:$0x1]
          %v398 = vlaneseq
          %v399 = vshrl.u32 %v398, 7
          %v400 = vsub.s32 0, %v399
          %v401 = vrot.slane %v396, %v400
          %v403 = vadd.f32 %v395, %v401
          %v404 = vpack.c.bf16 %v403, %v403
          %405 = vst [vmem:[#allocation2] sm:$0xf] %v404
          %406 = vst [vmem:[#allocation3] sm:$0xff] 0.0
        $region64: #{tpu_custom_call.1} parent=47 // pred_fallthru
          _
        %v407 = vld [vmem:[#allocation2] sm:$0xf]
        %v408 = vld [vmem:[#allocation7] sm:$0xf]
        %v409 = vld [vmem:[#allocation7 + $0x4] sm:$0xf]
        %v410 = vld [vmem:[#allocation7 + $0x8] sm:$0xf]
        %v411 = vld [vmem:[#allocation7 + $0xc] sm:$0xf]
        %v412 = vld [vmem:[#allocation7 + $0x10] sm:$0xf]
        %v413 = vld [vmem:[#allocation7 + $0x14] sm:$0xf]
        %v414 = vld [vmem:[#allocation7 + $0x18] sm:$0xf]
        %v415 = vld [vmem:[#allocation7 + $0x1c] sm:$0xf]
        %v416 = vld [vmem:[#allocation7 + $0x20] sm:$0xf]
        %v417 = vld [vmem:[#allocation7 + $0x24] sm:$0xf]
        %v418 = vld [vmem:[#allocation7 + $0x28] sm:$0xf]
        %v419 = vld [vmem:[#allocation7 + $0x2c] sm:$0xf]
        %v420 = vld [vmem:[#allocation7 + $0x30] sm:$0xf]
        %v421 = vld [vmem:[#allocation7 + $0x34] sm:$0xf]
        %v422 = vld [vmem:[#allocation7 + $0x38] sm:$0xf]
        %v423 = vld [vmem:[#allocation7 + $0x3c] sm:$0xf]
        %v424 = vld [vmem:[%s363] sm:$0x1]
        %v426 = vlaneseq
        %v427 = vshrl.u32 %v426, 7
        %v428 = vsub.s32 0, %v427
        %v429 = vrot.slane %v424, %v428
        %v447 = vunpack.c.l.b16 %v408
        %v448 = vunpack.c.l.b16 %v409
        %v449 = vunpack.c.l.b16 %v410
        %v450 = vunpack.c.l.b16 %v411
        %v451 = vunpack.c.l.b16 %v412
        %v452 = vunpack.c.l.b16 %v413
        %v453 = vunpack.c.l.b16 %v414
        %v454 = vunpack.c.l.b16 %v415
        %v455 = vunpack.c.l.b16 %v416
        %v456 = vunpack.c.l.b16 %v417
        %v457 = vunpack.c.l.b16 %v418
        %v458 = vunpack.c.l.b16 %v419
        %v459 = vunpack.c.l.b16 %v420
        %v460 = vunpack.c.l.b16 %v421
        %v461 = vunpack.c.l.b16 %v422
        %v462 = vunpack.c.l.b16 %v423
        %v463 = vpack.c.b16 %v448, %v447
        %v464 = vpack.c.b16 %v450, %v449
        %v465 = vpack.c.b16 %v452, %v451
        %v466 = vpack.c.b16 %v454, %v453
        %v467 = vpack.c.b16 %v456, %v455
        %v468 = vpack.c.b16 %v458, %v457
        %v469 = vpack.c.b16 %v460, %v459
        %v470 = vpack.c.b16 %v462, %v461
        %479 = vmatprep.subr.bf16.mxu0 0
        %480 = vmatpush1.bf16.msra.mxu0 %v463
        %481 = vmatprep.subr.bf16.mxu0 0
        %482 = vmatpush1.bf16.msra.mxu0 %v464
        %483 = vmatprep.subr.bf16.mxu0 0
        %484 = vmatpush1.bf16.msra.mxu0 %v465
        %485 = vmatprep.subr.bf16.mxu0 0
        %486 = vmatpush1.bf16.msra.mxu0 %v466
        %487 = vmatprep.subr.bf16.mxu0 0
        %488 = vmatpush1.bf16.msra.mxu0 %v467
        %489 = vmatprep.subr.bf16.mxu0 0
        %490 = vmatpush1.bf16.msra.mxu0 %v468
        %491 = vmatprep.subr.bf16.mxu0 0
        %492 = vmatpush1.bf16.msra.mxu0 %v469
        %493 = vmatprep.subr.bf16.mxu0 0
        %494 = vmatpush1.bf16.msra.mxu0 %v470
        %495 = vmatprep.subr.bf16.mxu0 0
        %496 = vmatpush1.bf16.msra.mxu0 0
        %497 = vmatprep.subr.bf16.mxu0 0
        %498 = vmatpush1.bf16.msra.mxu0 0
        %499 = vmatprep.subr.bf16.mxu0 0
        %500 = vmatpush1.bf16.msra.mxu0 0
        %501 = vmatprep.subr.bf16.mxu0 0
        %502 = vmatpush1.bf16.msra.mxu0 0
        %503 = vmatprep.subr.bf16.mxu0 0
        %504 = vmatpush1.bf16.msra.mxu0 0
        %505 = vmatprep.subr.bf16.mxu0 0
        %506 = vmatpush1.bf16.msra.mxu0 0
        %507 = vmatprep.subr.bf16.mxu0 0
        %508 = vmatpush1.bf16.msra.mxu0 0
        %509 = vmatprep.subr.bf16.mxu0 0
        %510 = vmatpush1.bf16.msra.mxu0 0
        %511 = vmatprep.mubr.bf16.mxu0 0
        %512 = vmatmul.mubr.bf16.gmra.mrb[0].mxu0 %v407
        %v513 = vpop.f32.mrb[0].mxu0
        %v514 = vadd.f32 %v429, %v513
        %v515 = vpop.f32.mrb[0].mxu0
        %v516 = vpop.f32.mrb[0].mxu0
        %v517 = vpop.f32.mrb[0].mxu0
        %518 = vdwg.mxu0
        %v519 = vmul.f32 %v514, 0.5
        %v520 = vmul.f32 %v514, 0.70710677
        %v521 = verf.f32.pop %v520
        %v522 = vadd.f32 %v521, 1.0
        %v523 = vmul.f32 %v519, %v522
        %v524 = vld [vmem:[#allocation3] sm:$0xff]
        %v525 = vpack.c.bf16 %v523, %v523
        %v526 = vld [vmem:[#allocation9] sm:$0xf]
        %v527 = vld [vmem:[#allocation9 + $0x4] sm:$0xf]
        %v528 = vld [vmem:[#allocation9 + $0x8] sm:$0xf]
        %v529 = vld [vmem:[#allocation9 + $0xc] sm:$0xf]
        %v530 = vld [vmem:[#allocation9 + $0x10] sm:$0xf]
        %v531 = vld [vmem:[#allocation9 + $0x14] sm:$0xf]
        %v532 = vld [vmem:[#allocation9 + $0x18] sm:$0xf]
        %v533 = vld [vmem:[#allocation9 + $0x1c] sm:$0xf]
        %v534 = vld [vmem:[#allocation9 + $0x20] sm:$0xf]
        %v535 = vld [vmem:[#allocation9 + $0x24] sm:$0xf]
        %v536 = vld [vmem:[#allocation9 + $0x28] sm:$0xf]
        %v537 = vld [vmem:[#allocation9 + $0x2c] sm:$0xf]
        %v538 = vld [vmem:[#allocation9 + $0x30] sm:$0xf]
        %v539 = vld [vmem:[#allocation9 + $0x34] sm:$0xf]
        %v540 = vld [vmem:[#allocation9 + $0x38] sm:$0xf]
        %v541 = vld [vmem:[#allocation9 + $0x3c] sm:$0xf]
        %v558 = vunpack.c.l.b16 %v526
        %v559 = vunpack.c.l.b16 %v527
        %v560 = vunpack.c.l.b16 %v528
        %v561 = vunpack.c.l.b16 %v529
        %v562 = vunpack.c.l.b16 %v530
        %v563 = vunpack.c.l.b16 %v531
        %v564 = vunpack.c.l.b16 %v532
        %v565 = vunpack.c.l.b16 %v533
        %v566 = vunpack.c.l.b16 %v534
        %v567 = vunpack.c.l.b16 %v535
        %v568 = vunpack.c.l.b16 %v536
        %v569 = vunpack.c.l.b16 %v537
        %v570 = vunpack.c.l.b16 %v538
        %v571 = vunpack.c.l.b16 %v539
        %v572 = vunpack.c.l.b16 %v540
        %v573 = vunpack.c.l.b16 %v541
        %v574 = vpack.c.b16 %v559, %v558
        %v575 = vpack.c.b16 %v561, %v560
        %v576 = vpack.c.b16 %v563, %v562
        %v577 = vpack.c.b16 %v565, %v564
        %v578 = vpack.c.b16 %v567, %v566
        %v579 = vpack.c.b16 %v569, %v568
        %v580 = vpack.c.b16 %v571, %v570
        %v581 = vpack.c.b16 %v573, %v572
        %590 = vmatprep.subr.bf16.mxu0 0
        %591 = vmatpush1.bf16.msra.mxu0 %v574
        %592 = vmatprep.subr.bf16.mxu0 0
        %593 = vmatpush1.bf16.msra.mxu0 %v575
        %594 = vmatprep.subr.bf16.mxu0 0
        %595 = vmatpush1.bf16.msra.mxu0 %v576
        %596 = vmatprep.subr.bf16.mxu0 0
        %597 = vmatpush1.bf16.msra.mxu0 %v577
        %598 = vmatprep.subr.bf16.mxu0 0
        %599 = vmatpush1.bf16.msra.mxu0 %v578
        %600 = vmatprep.subr.bf16.mxu0 0
        %601 = vmatpush1.bf16.msra.mxu0 %v579
        %602 = vmatprep.subr.bf16.mxu0 0
        %603 = vmatpush1.bf16.msra.mxu0 %v580
        %604 = vmatprep.subr.bf16.mxu0 0
        %605 = vmatpush1.bf16.msra.mxu0 %v581
        %606 = vmatprep.subr.bf16.mxu0 0
        %607 = vmatpush1.bf16.msra.mxu0 0
        %608 = vmatprep.subr.bf16.mxu0 0
        %609 = vmatpush1.bf16.msra.mxu0 0
        %610 = vmatprep.subr.bf16.mxu0 0
        %611 = vmatpush1.bf16.msra.mxu0 0
        %612 = vmatprep.subr.bf16.mxu0 0
        %613 = vmatpush1.bf16.msra.mxu0 0
        %614 = vmatprep.subr.bf16.mxu0 0
        %615 = vmatpush1.bf16.msra.mxu0 0
        %616 = vmatprep.subr.bf16.mxu0 0
        %617 = vmatpush1.bf16.msra.mxu0 0
        %618 = vmatprep.subr.bf16.mxu0 0
        %619 = vmatpush1.bf16.msra.mxu0 0
        %620 = vmatprep.subr.bf16.mxu0 0
        %621 = vmatpush1.bf16.msra.mxu0 0
        %622 = vmatprep.mubr.bf16.mxu0 0
        %623 = vmatmul.mubr.bf16.gmra.mrb[0].mxu0 %v525
        %v624 = vpop.f32.mrb[0].mxu0
        %v625 = vadd.f32 0.0, %v624
        %v626 = vpop.f32.mrb[0].mxu0
        %v627 = vpop.f32.mrb[0].mxu0
        %v628 = vpop.f32.mrb[0].mxu0
        %629 = vdwg.mxu0
        %v630 = vadd.f32 %v524, %v625
        %631 = vst [vmem:[#allocation3] sm:$0xff] %v630
        // Predicated region
        $region65: #{tpu_custom_call.1} parent=47 // pred_check
          %p632 = pneg %p366
        $region66: #{tpu_custom_call.1} parent=47 // pred_check_branch
          %634 = sbr.rel (%p632) target = $region68
        $region67: #{tpu_custom_call.1} parent=47 // pred_region
          %v635 = vld [vmem:[#allocation3] sm:$0xff]
          %v636 = vld [vmem:[%s6] sm:$0x1]
          %v638 = vlaneseq
          %v639 = vshrl.u32 %v638, 7
          %v640 = vsub.s32 0, %v639
          %v641 = vrot.slane %v636, %v640
          %v643 = vadd.f32 %v635, %v641
          %644 = vst [vmem:[%s360] sm:$0xff] %v643
        $region68: #{tpu_custom_call.1} parent=47 // pred_fallthru
          _
        %s645 = sand.u32 %s212, 1
        %s646 = scalar_lea.sflag [#allocation6], %s645
        %s647 = sand.u32 %s212, 1
        %s648 = smul.addr %s647, 8
        %s649 = scalar_lea.vmem [#allocation10], %s648
        // Predicated region
        $region69: #{tpu_custom_call.1} parent=47 // pred_check
          %p650 = pneg %p222
        $region70: #{tpu_custom_call.1} parent=47 // pred_check_branch
          %652 = sbr.rel (%p650) target = $region72
        $region71: #{tpu_custom_call.1} parent=47 // pred_region
          %s654 = ssub.s32 128, 128
          %655 = vsyncadd %s646, %s654
          %s656 = smul.addr %s29, 128
          %s657 = scalar_lea.hbm %s7, %s656
          %s659 = sshll.u32 %s649, 4
          %s660 = int_to_ptr.vmem [resolvable:$true] %s659
          %662 = dma.vmem_to_hbm [thread:$0]  %s660, 128, %s657, %s646
        $region72: #{tpu_custom_call.1} parent=47 // pred_fallthru
          _
      $region48: #{tpu_custom_call.1} parent=5 // pred_fallthru
        _
      %p663 = scmp.le.s32.totalorder 2, %s20
      // Predicated region
      $region73: #{tpu_custom_call.1} parent=5 // pred_check
        %p664 = pneg %p663
      $region74: #{tpu_custom_call.1} parent=5 // pred_check_branch
        %666 = sbr.rel (%p664) target = $region76
      $region75: #{tpu_custom_call.1} parent=5 // pred_region
        %s667 = ssub.s32 %s20, 2
        // Predicated region
        $region77: #{tpu_custom_call.1} parent=75 // pred_check
          %p668 = pneg %p228
        $region78: #{tpu_custom_call.1} parent=75 // pred_check_branch
          %670 = sbr.rel (%p668) target = $region80
        $region79: #{tpu_custom_call.1} parent=75 // pred_region
          %s671 = sand.u32 %s213, 1
          %s672 = scalar_lea.sflag [#allocation6], %s671
          %s673 = sand.u32 %s213, 1
          %s674 = smul.addr %s673, 8
          %s675 = scalar_lea.vmem [#allocation10], %s674
          %676 = dma.done %s672, 128
        $region80: #{tpu_custom_call.1} parent=75 // pred_fallthru
          _
      $region76: #{tpu_custom_call.1} parent=5 // pred_fallthru
        _
    $region6: #{tpu_custom_call.1} parent=1 // loop_footer
      %s24 = sadd.s32 1, %s20
    $region7: #{tpu_custom_call.1} parent=1 // loop_footer_branch
      %19 = sbr.rel target = $region3
    $region8: #{tpu_custom_call.1} parent=1 // loop_exit
      _
    %677 = vsyncpa [#allocation5], 1
    %s678 = scalar_lea.sflag [#allocation5], 1
    %679 = vsyncpa %s678, 1
    %680 = vsyncpa [#allocation8], 1
    %681 = vsyncpa [#allocation6], 1
    %s682 = scalar_lea.sflag [#allocation6], 1
    %683 = vsyncpa %s682, 1

</llo_original>
